<compile_context>
chip_gen: v7x
topology: tpu7x:2x2x1
jax: 0.10.0
libtpu: 0.0.40
codegen_flags: <defaults>
</compile_context>

<pallas_src>
import functools

import jax
import jax.numpy as jnp
import numpy as np
from jax.experimental import pallas as pl
from jax.experimental.pallas import tpu as pltpu


def _round_up(x, m):
    return ((x + m - 1) // m) * m


def _t_atten_kernel(u_ref, m_ref, w1_ref, b1_ref, w2_ref, b2_ref, w3_ref, b3_ref,
                    uatt_ref, wts_ref, *, activation, num_regions, approx_recip):
    # u_ref:  (TB, Rp, E)  tile of (region-padded) text features
    # m_ref:  (TB, E)      tile of previous textual memory
    # w1/w2:  (E, E)       fc weights pre-transposed to x @ W^T layout (f32 or bf16)
    # b1/b2:  (1, E) f32   fc biases
    # w3:     (1, E) f32   fc3 weight row (E -> 1)
    # b3:     (1, 1) f32   fc3 bias
    act = jnp.tanh if activation == "tanh" else jax.nn.sigmoid
    TB, Rp, E = u_ref.shape
    mm_dtype = w1_ref.dtype                       # bf16 when use_bf16_matmul

    u = u_ref[...]
    m = m_ref[...]
    u_mm = u.astype(mm_dtype)                     # identity when already matching
    m_mm = m.astype(mm_dtype)

    # embedding_1: act(fc1(u_t)) — ONE tall (TB*Rp, E) @ (E, E) matmul per tile.
    pre1 = jnp.dot(u_mm.reshape(TB * Rp, E), w1_ref[...],
                   preferred_element_type=jnp.float32)
    W_u = act(pre1 + b1_ref[...])                               # (TB*Rp, E) f32

    # embedding_2: act(fc2(m_u))
    pre2 = jnp.dot(m_mm, w2_ref[...], preferred_element_type=jnp.float32)
    W_um = act(pre2 + b2_ref[...])                              # (TB, E) f32

    # embedding_3 folded into the memory branch:
    #   fc3(W_u * W_um) = sum_e W_u * (W_um * w3) + b3
    # -> no materialized h tensor and one fewer (TB,Rp,E) multiply.
    W_um3 = W_um * w3_ref[...]                                  # (TB, E) f32
    scores = (jnp.sum(W_u.reshape(TB, Rp, E) * W_um3[:, None, :], axis=-1)
              + b3_ref[...])                                    # (TB, Rp) f32

    # Padded regions (Rp > num_regions) must get zero softmax mass.
    if Rp > num_regions:
        col = jax.lax.broadcasted_iota(jnp.int32, (TB, Rp), 1)
        scores = jnp.where(col < num_regions, scores, -1e30)

    # softmax over regions (dim=1)
    scores = scores - jnp.max(scores, axis=1, keepdims=True)
    e = jnp.exp(scores)
    denom = jnp.sum(e, axis=1, keepdims=True)
    if approx_recip:
        weights = e * pl.reciprocal(denom, approx=True)
    else:
        weights = e / denom                                     # exact (user-visible)

    # attention-weighted encoding of the ORIGINAL u_t, then l2norm (VSE eps style).
    u_att = jnp.sum(weights[:, :, None] * u.astype(jnp.float32), axis=1)   # (TB, E)
    norm = jnp.sqrt(jnp.sum(u_att * u_att, axis=-1, keepdims=True)) + 1e-8
    if approx_recip:
        u_att = u_att * pl.reciprocal(norm, approx=True)
    else:
        u_att = u_att / norm

    uatt_ref[...] = u_att.astype(uatt_ref.dtype)
    wts_ref[...] = weights.astype(wts_ref.dtype)


def _vmem_limit_bytes():
    """Scoped VMEM limit: ~100 MiB on 128-MiB chips, ~51 MiB on 64-MiB chips."""
    cap = 64 * 2**20                              # conservative fallback (v7x per-TC)
    try:
        cap = int(pltpu.get_tpu_info().vmem_capacity_bytes)
    except Exception:
        pass
    return int(min(100 * 2**20, 0.8 * cap))


def _estimate_vmem(tb, Rp, E, in_b, w_b, out_b):
    """Rough VMEM bytes for one grid configuration (double-buffered BlockSpecs)."""
    tile_u = 2 * tb * Rp * E * in_b               # u_t tile, double-buffered
    tile_m = 2 * tb * E * in_b                    # m_u tile
    tile_out = 2 * tb * E * out_b + 2 * tb * Rp * 4
    resident = 2 * (2 * E * E * w_b + (3 * E + 1) * 4)   # weights/biases (2 buffers)
    live_f32 = (2 * tb * Rp * E + 3 * tb * E) * 4        # W_u + elementwise temps
    return tile_u + tile_m + tile_out + resident + live_f32


def _pick_block_batch(B, Rp, E, in_dtype, w_dtype, out_dtype, vmem_budget):
    """Pick TB = whole batch elements per grid step."""
    in_b = jnp.dtype(in_dtype).itemsize
    w_b = jnp.dtype(w_dtype).itemsize
    out_b = jnp.dtype(out_dtype).itemsize
    # Sublane alignment of the 2-D (TB, E)/(TB, Rp) blocks when TB != B.
    align = {4: 8, 2: 16, 1: 32}.get(in_b, 8)

    cands = [tb for tb in range(1, B + 1)
             if B % tb == 0 and (tb == B or tb % align == 0)]
    fits = [tb for tb in cands
            if _estimate_vmem(tb, Rp, E, in_b, w_b, out_b) <= vmem_budget]
    if not fits:
        fits = [min(cands)]                       # degrade gracefully

    ROW_TARGET = 1024                             # TB*Rp matmul rows per grid step
    under = [tb for tb in fits if tb * Rp <= ROW_TARGET]
    best = max(under) if under else min(fits)

    # Prefer >= 2 grid steps (v7x megacore split) if each step stays well amortized.
    if B // best < 2:
        multi = [tb for tb in fits if B // tb >= 2 and tb * Rp >= 256]
        if multi:
            best = max(multi)
    return best


def t_single_modal_atten(u_t, m_u, params, *, activation="tanh", block_batch=None,
                         use_bf16_matmul=False, approx_recip=False):
    """Forward of T_single_modal_atten.

    u_t:    (B, R, E) text features;  m_u: (B, E) previous textual memory.
    params: PyTorch-layout tensors: w1, w2: (E, E); b1, b2: (E,); w3: (1, E); b3: (1,)
    Returns (u_att: (B, E) in u_t.dtype, weights: (B, R) in float32).
    """
    B, R, E = u_t.shape
    assert m_u.shape == (B, E)

    # Keep the region axis sublane-aligned so the in-kernel reshape is layout-free.
    Rp = _round_up(R, 8)
    u_in = jnp.pad(u_t, ((0, 0), (0, Rp - R), (0, 0))) if Rp != R else u_t

    w_dtype = jnp.bfloat16 if use_bf16_matmul else jnp.dtype(params["w1"].dtype)
    w1_t = jnp.asarray(params["w1"]).T.astype(w_dtype)      # x @ W^T layout
    w2_t = jnp.asarray(params["w2"]).T.astype(w_dtype)
    b1 = jnp.asarray(params["b1"]).reshape(1, E).astype(jnp.float32)
    b2 = jnp.asarray(params["b2"]).reshape(1, E).astype(jnp.float32)
    w3 = jnp.asarray(params["w3"]).reshape(1, E).astype(jnp.float32)
    b3 = jnp.asarray(params["b3"]).reshape(1, 1).astype(jnp.float32)

    vmem_limit = _vmem_limit_bytes()
    if block_batch is None:
        tb = _pick_block_batch(B, Rp, E, u_t.dtype, w_dtype, u_t.dtype,
                               int(0.9 * vmem_limit))
    else:
        tb = block_batch
    align = {4: 8, 2: 16, 1: 32}.get(jnp.dtype(u_t.dtype).itemsize, 8)
    assert B % tb == 0 and (tb == B or tb % align == 0), (B, R, E, tb)
    grid = (B // tb,)

    out_shapes = (jax.ShapeDtypeStruct((B, E), u_t.dtype),       # u_att
                  jax.ShapeDtypeStruct((B, Rp), jnp.float32))     # weights (padded R)

    grid_spec = pltpu.PrefetchScalarGridSpec(
        num_scalar_prefetch=0,
        grid=grid,
        in_specs=[
            pl.BlockSpec((tb, Rp, E), lambda i: (i, 0, 0)),   # u_t tile
            pl.BlockSpec((tb, E), lambda i: (i, 0)),          # m_u tile
            pl.BlockSpec((E, E), lambda i: (0, 0)),           # W1^T (fetched once)
            pl.BlockSpec((1, E), lambda i: (0, 0)),           # b1
            pl.BlockSpec((E, E), lambda i: (0, 0)),           # W2^T (fetched once)
            pl.BlockSpec((1, E), lambda i: (0, 0)),           # b2
            pl.BlockSpec((1, E), lambda i: (0, 0)),           # w3 row
            pl.BlockSpec((1, 1), lambda i: (0, 0)),           # b3
        ],
        out_specs=[
            pl.BlockSpec((tb, E), lambda i: (i, 0)),          # u_att
            pl.BlockSpec((tb, Rp), lambda i: (i, 0)),         # weights
        ],
    )

    in_b = jnp.dtype(u_t.dtype).itemsize
    w_b = jnp.dtype(w_dtype).itemsize
    flops = 2 * B * Rp * E * E + 2 * B * E * E + 6 * B * Rp * E + 2 * B * E
    transcendentals = B * Rp * E + B * E + B * Rp + 2 * B
    bytes_accessed = (B * Rp * E * in_b + B * E * in_b
                      + 2 * E * E * w_b + (3 * E + 1) * 4
                      + B * E * in_b + B * Rp * 4)

    kernel = functools.partial(_t_atten_kernel, activation=activation,
                               num_regions=R, approx_recip=approx_recip)
    u_att, wts = pl.pallas_call(
        kernel,
        out_shape=out_shapes,
        grid_spec=grid_spec,
        compiler_params=pltpu.CompilerParams(
            dimension_semantics=("parallel",),
            vmem_limit_bytes=vmem_limit),
        cost_estimate=pl.CostEstimate(
            flops=flops, transcendentals=transcendentals,
            bytes_accessed=bytes_accessed),
    )(u_in, m_u, w1_t, b1, w2_t, b2, w3, b3)

    weights = wts[:, :R] if Rp != R else wts
    return u_att, weights


def _reference(u_t, m_u, params, activation="tanh"):
    act = jnp.tanh if activation == "tanh" else jax.nn.sigmoid
    W_u = act(jnp.einsum("bre,fe->brf", u_t, params["w1"]) + params["b1"])
    W_um = act(jnp.einsum("be,fe->bf", m_u, params["w2"]) + params["b2"])
    h = W_u * W_um[:, None, :]
    a = jnp.einsum("bre,oe->bro", h, params["w3"])[..., 0] + params["b3"][0]
    weights = jax.nn.softmax(a, axis=1)
    u_att = jnp.sum(weights[:, :, None] * u_t, axis=1)
    norm = jnp.sqrt(jnp.sum(u_att * u_att, axis=-1, keepdims=True)) + 1e-8
    return u_att / norm, weights


if __name__ == "__main__":
    def make_inputs(B, R, E, key):
        ks = jax.random.split(key, 8)
        u_t = jax.random.normal(ks[0], (B, R, E), dtype=jnp.float32)
        m_u = jax.random.normal(ks[1], (B, E), dtype=jnp.float32)
        bound = 1.0 / np.sqrt(E)
        params = {
            "w1": jax.random.uniform(ks[2], (E, E), jnp.float32, -bound, bound),
            "b1": jax.random.uniform(ks[3], (E,), jnp.float32, -bound, bound),
            "w2": jax.random.uniform(ks[4], (E, E), jnp.float32, -bound, bound),
            "b2": jax.random.uniform(ks[5], (E,), jnp.float32, -bound, bound),
            "w3": jax.random.uniform(ks[6], (1, E), jnp.float32, -bound, bound),
            "b3": jax.random.uniform(ks[7], (1,), jnp.float32, -bound, bound),
        }
        return u_t, m_u, params

    def run_case(B, R, E, key, *, block_batch=None, use_bf16_matmul=False,
                 activation="tanh", rtol=2e-3, atol=2e-3):
        u_t, m_u, params = make_inputs(B, R, E, key)
        u_att, weights = t_single_modal_atten(
            u_t, m_u, params, activation=activation, block_batch=block_batch,
            use_bf16_matmul=use_bf16_matmul)
        jax.block_until_ready((u_att, weights))
        assert u_att.shape == (B, E) and weights.shape == (B, R)
        ref_att, ref_w = _reference(u_t, m_u, params, activation=activation)
        np.testing.assert_allclose(np.asarray(u_att, dtype=np.float32),
                                   np.asarray(ref_att), rtol=rtol, atol=atol)
        np.testing.assert_allclose(np.asarray(weights, dtype=np.float32),
                                   np.asarray(ref_w), rtol=rtol, atol=atol)

    key = jax.random.PRNGKey(0)
    k1, k2, k3 = jax.random.split(key, 3)
    # Small shapes consistent with the module: batch=2, num_words(R)=8, embed_dim=32.
    run_case(2, 8, 32, k1)
    # Multi-step grid + non-multiple-of-8 region count (exercises padding + masking).
    run_case(16, 12, 32, k2, block_batch=8)
    # bf16 MXU path (halved resident-weight VMEM, ~3x MXU throughput on v6e/v7x).
    run_case(8, 8, 128, k3, use_bf16_matmul=True, rtol=2e-2, atol=2e-2)
    print("KERNEL_OK")
</pallas_src>

<mosaic_0001>
module attributes {stable_mosaic.version = 11 : i64} {
  func.func @_t_atten_kernel(%arg0: i32, %arg1: memref<2x8x32xf32, #tpu.memory_space<vmem>>, %arg2: memref<2x32xf32, #tpu.memory_space<vmem>>, %arg3: memref<32x32xf32, #tpu.memory_space<vmem>>, %arg4: memref<1x32xf32, #tpu.memory_space<vmem>>, %arg5: memref<32x32xf32, #tpu.memory_space<vmem>>, %arg6: memref<1x32xf32, #tpu.memory_space<vmem>>, %arg7: memref<1x32xf32, #tpu.memory_space<vmem>>, %arg8: memref<1x1xf32, #tpu.memory_space<vmem>>, %arg9: memref<2x32xf32, #tpu.memory_space<vmem>>, %arg10: memref<2x8xf32, #tpu.memory_space<vmem>>) attributes {dimension_semantics = [#tpu.dimension_semantics<parallel>], iteration_bounds = array<i64: 1>, scalar_prefetch = 0 : i64, scratch_operands = 0 : i64, tpu.core_type = #tpu.core_type<tc>, window_params = [{transform_indices = @transform_0, window_bounds = array<i64: 2, 8, 32>}, {transform_indices = @transform_1, window_bounds = array<i64: 2, 32>}, {pipeline_mode = #tpu.pipeline_mode<synchronous>, transform_indices = @transform_2, window_bounds = array<i64: 32, 32>}, {pipeline_mode = #tpu.pipeline_mode<synchronous>, transform_indices = @transform_3, window_bounds = array<i64: 1, 32>}, {pipeline_mode = #tpu.pipeline_mode<synchronous>, transform_indices = @transform_4, window_bounds = array<i64: 32, 32>}, {pipeline_mode = #tpu.pipeline_mode<synchronous>, transform_indices = @transform_5, window_bounds = array<i64: 1, 32>}, {pipeline_mode = #tpu.pipeline_mode<synchronous>, transform_indices = @transform_6, window_bounds = array<i64: 1, 32>}, {pipeline_mode = #tpu.pipeline_mode<synchronous>, transform_indices = @transform_7, window_bounds = array<i64: 1, 1>}, {transform_indices = @transform_8, window_bounds = array<i64: 2, 32>}, {transform_indices = @transform_9, window_bounds = array<i64: 2, 8>}]} {
    %c0 = arith.constant 0 : index
    %c0_0 = arith.constant 0 : index
    %c0_1 = arith.constant 0 : index
    %0 = vector.load %arg1[%c0, %c0_0, %c0_1] : memref<2x8x32xf32, #tpu.memory_space<vmem>>, vector<2x8x32xf32>
    %c0_2 = arith.constant 0 : index
    %c0_3 = arith.constant 0 : index
    %1 = vector.load %arg2[%c0_2, %c0_3] : memref<2x32xf32, #tpu.memory_space<vmem>>, vector<2x32xf32>
    %2 = vector.shape_cast %0 : vector<2x8x32xf32> to vector<16x32xf32>
    %c0_4 = arith.constant 0 : index
    %c0_5 = arith.constant 0 : index
    %3 = vector.load %arg3[%c0_4, %c0_5] : memref<32x32xf32, #tpu.memory_space<vmem>>, vector<32x32xf32>
    %cst = arith.constant dense<0.000000e+00> : vector<16x32xf32>
    %4 = tpu.matmul %2, %3, %cst {dimension_numbers = #tpu.dot_dimension_numbers<[1], [0], [0], [1], [0, 0, 1, 1], [], []>} : vector<16x32xf32>, vector<32x32xf32>, vector<16x32xf32> -> vector<16x32xf32>
    %c0_6 = arith.constant 0 : index
    %c0_7 = arith.constant 0 : index
    %5 = vector.load %arg4[%c0_6, %c0_7] : memref<1x32xf32, #tpu.memory_space<vmem>>, vector<1x32xf32>
    %6 = vector.broadcast %5 : vector<1x32xf32> to vector<16x32xf32>
    %7 = arith.addf %4, %6 : vector<16x32xf32>
    %8 = math.tanh %7 : vector<16x32xf32>
    %c0_8 = arith.constant 0 : index
    %c0_9 = arith.constant 0 : index
    %9 = vector.load %arg5[%c0_8, %c0_9] : memref<32x32xf32, #tpu.memory_space<vmem>>, vector<32x32xf32>
    %cst_10 = arith.constant dense<0.000000e+00> : vector<2x32xf32>
    %10 = tpu.matmul %1, %9, %cst_10 {dimension_numbers = #tpu.dot_dimension_numbers<[1], [0], [0], [1], [0, 0, 1, 1], [], []>} : vector<2x32xf32>, vector<32x32xf32>, vector<2x32xf32> -> vector<2x32xf32>
    %c0_11 = arith.constant 0 : index
    %c0_12 = arith.constant 0 : index
    %11 = vector.load %arg6[%c0_11, %c0_12] : memref<1x32xf32, #tpu.memory_space<vmem>>, vector<1x32xf32>
    %12 = vector.broadcast %11 : vector<1x32xf32> to vector<2x32xf32>
    %13 = arith.addf %10, %12 : vector<2x32xf32>
    %14 = math.tanh %13 : vector<2x32xf32>
    %c0_13 = arith.constant 0 : index
    %c0_14 = arith.constant 0 : index
    %15 = vector.load %arg7[%c0_13, %c0_14] : memref<1x32xf32, #tpu.memory_space<vmem>>, vector<1x32xf32>
    %16 = vector.broadcast %15 : vector<1x32xf32> to vector<2x32xf32>
    %17 = arith.mulf %14, %16 : vector<2x32xf32>
    %18 = vector.shape_cast %8 : vector<16x32xf32> to vector<2x8x32xf32>
    %19 = vector.shape_cast %17 : vector<2x32xf32> to vector<2x1x32xf32>
    %20 = vector.broadcast %19 : vector<2x1x32xf32> to vector<2x8x32xf32>
    %21 = arith.mulf %18, %20 : vector<2x8x32xf32>
    %cst_15 = arith.constant dense<0.000000e+00> : vector<2x8xf32>
    %22 = vector.multi_reduction <add>, %21, %cst_15 [2] : vector<2x8x32xf32> to vector<2x8xf32>
    %c0_16 = arith.constant 0 : index
    %c0_17 = arith.constant 0 : index
    %23 = vector.load %arg8[%c0_16, %c0_17] : memref<1x1xf32, #tpu.memory_space<vmem>>, vector<1x1xf32>
    %24 = vector.broadcast %23 : vector<1x1xf32> to vector<2x8xf32>
    %25 = arith.addf %22, %24 : vector<2x8xf32>
    %cst_18 = arith.constant dense<0xFF800000> : vector<2xf32>
    %26 = vector.multi_reduction <maximumf>, %25, %cst_18 [1] : vector<2x8xf32> to vector<2xf32>
    %27 = vector.shape_cast %26 : vector<2xf32> to vector<2x1xf32>
    %28 = vector.broadcast %27 : vector<2x1xf32> to vector<2x8xf32>
    %29 = arith.subf %25, %28 : vector<2x8xf32>
    %30 = math.exp %29 : vector<2x8xf32>
    %cst_19 = arith.constant dense<0.000000e+00> : vector<2xf32>
    %31 = vector.multi_reduction <add>, %30, %cst_19 [1] : vector<2x8xf32> to vector<2xf32>
    %32 = vector.shape_cast %31 : vector<2xf32> to vector<2x1xf32>
    %33 = vector.broadcast %32 : vector<2x1xf32> to vector<2x8xf32>
    %34 = arith.divf %30, %33 : vector<2x8xf32>
    %35 = vector.shape_cast %34 : vector<2x8xf32> to vector<2x8x1xf32>
    %36 = vector.broadcast %35 : vector<2x8x1xf32> to vector<2x8x32xf32>
    %37 = arith.mulf %36, %0 : vector<2x8x32xf32>
    %cst_20 = arith.constant dense<0.000000e+00> : vector<2x32xf32>
    %38 = vector.multi_reduction <add>, %37, %cst_20 [1] : vector<2x8x32xf32> to vector<2x32xf32>
    %39 = arith.mulf %38, %38 : vector<2x32xf32>
    %cst_21 = arith.constant dense<0.000000e+00> : vector<2xf32>
    %40 = vector.multi_reduction <add>, %39, %cst_21 [1] : vector<2x32xf32> to vector<2xf32>
    %41 = vector.shape_cast %40 : vector<2xf32> to vector<2x1xf32>
    %42 = math.sqrt %41 : vector<2x1xf32>
    %cst_22 = arith.constant 9.99999993E-9 : f32
    %43 = vector.broadcast %cst_22 : f32 to vector<2x1xf32>
    %44 = arith.addf %42, %43 : vector<2x1xf32>
    %45 = vector.broadcast %44 : vector<2x1xf32> to vector<2x32xf32>
    %46 = arith.divf %38, %45 : vector<2x32xf32>
    %c0_23 = arith.constant 0 : index
    %c0_24 = arith.constant 0 : index
    %47 = vector.load %arg9[%c0_23, %c0_24] : memref<2x32xf32, #tpu.memory_space<vmem>>, vector<2x32xf32>
    tpu.vector_store %arg9[%c0_23, %c0_24], %46 {strides = array<i32>} : memref<2x32xf32, #tpu.memory_space<vmem>>, vector<2x32xf32>,
    %c0_25 = arith.constant 0 : index
    %c0_26 = arith.constant 0 : index
    %48 = vector.load %arg10[%c0_25, %c0_26] : memref<2x8xf32, #tpu.memory_space<vmem>>, vector<2x8xf32>
    tpu.vector_store %arg10[%c0_25, %c0_26], %34 {strides = array<i32>} : memref<2x8xf32, #tpu.memory_space<vmem>>, vector<2x8xf32>,
    return
  }
  func.func @transform_0(%arg0: i32) -> (i32, i32, i32) {
    %c0_i32 = arith.constant 0 : i32
    %c0_i32_0 = arith.constant 0 : i32
    %c0_i32_1 = arith.constant 0 : i32
    return %arg0, %c0_i32, %c0_i32_0 : i32, i32, i32
  }
  func.func @transform_1(%arg0: i32) -> (i32, i32) {
    %c0_i32 = arith.constant 0 : i32
    %c0_i32_0 = arith.constant 0 : i32
    return %arg0, %c0_i32 : i32, i32
  }
  func.func @transform_2(%arg0: i32) -> (i32, i32) {
    %c0_i32 = arith.constant 0 : i32
    %c0_i32_0 = arith.constant 0 : i32
    %c0_i32_1 = arith.constant 0 : i32
    return %c0_i32, %c0_i32_0 : i32, i32
  }
  func.func @transform_3(%arg0: i32) -> (i32, i32) {
    %c0_i32 = arith.constant 0 : i32
    %c0_i32_0 = arith.constant 0 : i32
    %c0_i32_1 = arith.constant 0 : i32
    return %c0_i32, %c0_i32_0 : i32, i32
  }
  func.func @transform_4(%arg0: i32) -> (i32, i32) {
    %c0_i32 = arith.constant 0 : i32
    %c0_i32_0 = arith.constant 0 : i32
    %c0_i32_1 = arith.constant 0 : i32
    return %c0_i32, %c0_i32_0 : i32, i32
  }
  func.func @transform_5(%arg0: i32) -> (i32, i32) {
    %c0_i32 = arith.constant 0 : i32
    %c0_i32_0 = arith.constant 0 : i32
    %c0_i32_1 = arith.constant 0 : i32
    return %c0_i32, %c0_i32_0 : i32, i32
  }
  func.func @transform_6(%arg0: i32) -> (i32, i32) {
    %c0_i32 = arith.constant 0 : i32
    %c0_i32_0 = arith.constant 0 : i32
    %c0_i32_1 = arith.constant 0 : i32
    return %c0_i32, %c0_i32_0 : i32, i32
  }
  func.func @transform_7(%arg0: i32) -> (i32, i32) {
    %c0_i32 = arith.constant 0 : i32
    %c0_i32_0 = arith.constant 0 : i32
    %c0_i32_1 = arith.constant 0 : i32
    return %c0_i32, %c0_i32_0 : i32, i32
  }
  func.func @transform_8(%arg0: i32) -> (i32, i32) {
    %c0_i32 = arith.constant 0 : i32
    %c0_i32_0 = arith.constant 0 : i32
    return %arg0, %c0_i32 : i32, i32
  }
  func.func @transform_9(%arg0: i32) -> (i32, i32) {
    %c0_i32 = arith.constant 0 : i32
    %c0_i32_0 = arith.constant 0 : i32
    return %arg0, %c0_i32 : i32, i32
  }
}

</mosaic_0001>

<llo_original>
// kernel: tpu_custom_call.1
$region0: #{tpu_custom_call.1}
  #allocation0 [shape = 'u32[]', space=smem, size = 0x4, offset = 0x4, fixed_abs, tag = 'smem constant byte address 0x4 - core index']
  #allocation1 [shape = 'u32[144,128]{1,0:T(1,128)}', space=vmem, size = 0x12000, scoped, tag = 'internal scratch']
  #allocation2 [shape = 'f32[1,1]{1,0:T(1,128)S(1)}', space=vmem, size = 0x200, scoped, tag = 'scoped memory for tpu_custom_call.1']
  %s0 = inlined_call_operand.hbm [shape: f32[2,8,32], index: 0, kind: input, shape index: {}]
  %s1 = inlined_call_operand.vmem [shape: f32[2,32], index: 1, kind: input, shape index: {}]
  %s2 = inlined_call_operand.hbm [shape: f32[32,32], index: 2, kind: input, shape index: {}]
  %s3 = inlined_call_operand.vmem [shape: f32[1,32], index: 3, kind: input, shape index: {}]
  %s4 = inlined_call_operand.hbm [shape: f32[32,32], index: 4, kind: input, shape index: {}]
  %s5 = inlined_call_operand.vmem [shape: f32[1,32], index: 5, kind: input, shape index: {}]
  %s6 = inlined_call_operand.vmem [shape: f32[1,32], index: 6, kind: input, shape index: {}]
  %s7 = inlined_call_operand.<no memory space> [shape: f32[1,1], index: 7, kind: input, shape index: {}]
  %s8 = inlined_call_operand.hbm [shape: f32[2,32], index: 8, kind: output, shape index: {0}]
  %s9 = inlined_call_operand.hbm [shape: f32[2,8], index: 9, kind: output, shape index: {1}]
  %10 = xla_tuple %s8, %s9
  %s11 = sld [smem:[#allocation0]]
  $region62: #{tpu_custom_call.1} parent=0
    _
  %s13 = ssub.s32 1, %s11
  %s14 = scalar_select 0, %s13, %s11
  %v15 = vstv %s7
  %16 = vst [vmem:[#allocation2] sm:$0x1] %v15
  $region1: #{tpu_custom_call.1} parent=0
    #allocation3 [shape = 'u8[8192]{0}', space=vmem, size = 0x2000, scoped, tag = 'input window, operand 0, single buffered']
    #allocation4 [shape = 's32[1]{0}', space=sflag, size = 0x4, scoped, tag = 'scoped memory for tpu_custom_call.1']
    #allocation5 [shape = 's32[1]{0}', space=sflag, size = 0x4, scoped, tag = 'scoped memory for tpu_custom_call.1']
    #allocation6 [shape = 'u8[16384]{0}', space=vmem, size = 0x4000, scoped, tag = 'input window, operand 2, single buffered']
    #allocation7 [shape = 's32[1]{0}', space=sflag, size = 0x4, scoped, tag = 'scoped memory for tpu_custom_call.1']
    #allocation8 [shape = 'u8[16384]{0}', space=vmem, size = 0x4000, scoped, tag = 'input window, operand 4, single buffered']
    #allocation9 [shape = 'u8[1024]{0}', space=vmem, size = 0x400, scoped, tag = 'output window, operand 0, single buffered']
    #allocation10 [shape = 'u8[1024]{0}', space=vmem, size = 0x400, scoped, tag = 'output window, operand 1, single buffered']
    #allocation11 [shape = 's32[1]{0}', space=sflag, size = 0x4, scoped, tag = 'scoped memory for tpu_custom_call.1']
    %17 = vsyncpa [#allocation4], 0
    %18 = vsyncpa [#allocation7], 0
    %19 = vsyncpa [#allocation5], 0
    %20 = vsyncpa [#allocation11], 0
    // Predicated region
    $region2: #{tpu_custom_call.1} parent=1 // pred_check
      _
    $region3: #{tpu_custom_call.1} parent=1 // pred_check_branch
      %22 = sbr.rel (0) target = $region5
    $region4: #{tpu_custom_call.1} parent=1 // pred_region
      %s24 = ssub.s32 256, 256
      %25 = vsyncadd [#allocation4], %s24
      %s26 = sshll.u32 [#allocation3], 4
      %s27 = int_to_ptr.vmem [resolvable:$true] %s26
      %32 = dma.hbm_to_vmem [thread:$0]  %s0, 256, %s27, [#allocation4], 128, 128, 8
    $region5: #{tpu_custom_call.1} parent=1 // pred_fallthru
      _
    // Predicated region
    $region6: #{tpu_custom_call.1} parent=1 // pred_check
      _
    $region7: #{tpu_custom_call.1} parent=1 // pred_check_branch
      %34 = sbr.rel (0) target = $region9
    $region8: #{tpu_custom_call.1} parent=1 // pred_region
      _
    $region9: #{tpu_custom_call.1} parent=1 // pred_fallthru
      _
    // Predicated region
    $region10: #{tpu_custom_call.1} parent=1 // pred_check
      _
    $region11: #{tpu_custom_call.1} parent=1 // pred_check_branch
      %36 = sbr.rel (0) target = $region13
    $region12: #{tpu_custom_call.1} parent=1 // pred_region
      %s38 = ssub.s32 512, 512
      %39 = vsyncadd [#allocation7], %s38
      %s40 = sshll.u32 [#allocation6], 4
      %s41 = int_to_ptr.vmem [resolvable:$true] %s40
      %46 = dma.hbm_to_vmem [thread:$0]  %s2, 512, %s41, [#allocation7], 128, 128, 8
    $region13: #{tpu_custom_call.1} parent=1 // pred_fallthru
      _
    // Predicated region
    $region14: #{tpu_custom_call.1} parent=1 // pred_check
      _
    $region15: #{tpu_custom_call.1} parent=1 // pred_check_branch
      %48 = sbr.rel (0) target = $region17
    $region16: #{tpu_custom_call.1} parent=1 // pred_region
      _
    $region17: #{tpu_custom_call.1} parent=1 // pred_fallthru
      _
    // Predicated region
    $region18: #{tpu_custom_call.1} parent=1 // pred_check
      _
    $region19: #{tpu_custom_call.1} parent=1 // pred_check_branch
      %50 = sbr.rel (0) target = $region21
    $region20: #{tpu_custom_call.1} parent=1 // pred_region
      %s52 = ssub.s32 512, 512
      %53 = vsyncadd [#allocation7], %s52
      %s54 = sshll.u32 [#allocation8], 4
      %s55 = int_to_ptr.vmem [resolvable:$true] %s54
      %60 = dma.hbm_to_vmem [thread:$0]  %s4, 512, %s55, [#allocation7], 128, 128, 8
    $region21: #{tpu_custom_call.1} parent=1 // pred_fallthru
      _
    // Predicated region
    $region22: #{tpu_custom_call.1} parent=1 // pred_check
      _
    $region23: #{tpu_custom_call.1} parent=1 // pred_check_branch
      %62 = sbr.rel (0) target = $region25
    $region24: #{tpu_custom_call.1} parent=1 // pred_region
      _
    $region25: #{tpu_custom_call.1} parent=1 // pred_fallthru
      _
    // Predicated region
    $region26: #{tpu_custom_call.1} parent=1 // pred_check
      _
    $region27: #{tpu_custom_call.1} parent=1 // pred_check_branch
      %64 = sbr.rel (0) target = $region29
    $region28: #{tpu_custom_call.1} parent=1 // pred_region
      _
    $region29: #{tpu_custom_call.1} parent=1 // pred_fallthru
      _
    // Predicated region
    $region30: #{tpu_custom_call.1} parent=1 // pred_check
      _
    $region31: #{tpu_custom_call.1} parent=1 // pred_check_branch
      %66 = sbr.rel (0) target = $region33
    $region32: #{tpu_custom_call.1} parent=1 // pred_region
      _
    $region33: #{tpu_custom_call.1} parent=1 // pred_fallthru
      _
    // Predicated region
    $region34: #{tpu_custom_call.1} parent=1 // pred_check
      _
    $region35: #{tpu_custom_call.1} parent=1 // pred_check_branch
      %68 = sbr.rel (0) target = $region37
    $region36: #{tpu_custom_call.1} parent=1 // pred_region
      %69 = dma.done [#allocation4], 256
    $region37: #{tpu_custom_call.1} parent=1 // pred_fallthru
      _
    // Predicated region
    $region38: #{tpu_custom_call.1} parent=1 // pred_check
      _
    $region39: #{tpu_custom_call.1} parent=1 // pred_check_branch
      %71 = sbr.rel (0) target = $region41
    $region40: #{tpu_custom_call.1} parent=1 // pred_region
      %72 = dma.done [#allocation7], 512
    $region41: #{tpu_custom_call.1} parent=1 // pred_fallthru
      _
    // Predicated region
    $region42: #{tpu_custom_call.1} parent=1 // pred_check
      _
    $region43: #{tpu_custom_call.1} parent=1 // pred_check_branch
      %74 = sbr.rel (0) target = $region45
    $region44: #{tpu_custom_call.1} parent=1 // pred_region
      %75 = dma.done [#allocation7], 512
    $region45: #{tpu_custom_call.1} parent=1 // pred_fallthru
      _
    %v76 = vld [vmem:[#allocation3] sm:$0xff]
    %v77 = vld [vmem:[#allocation3 + $0x8] sm:$0xff]
    %v78 = vld [vmem:[%s1] sm:$0x3]
    %v79 = vld [vmem:[#allocation6] sm:$0xff]
    %v80 = vld [vmem:[#allocation6 + $0x8] sm:$0xff]
    %v81 = vld [vmem:[#allocation6 + $0x10] sm:$0xff]
    %v82 = vld [vmem:[#allocation6 + $0x18] sm:$0xff]
    %v83 = vld [vmem:[%s3] sm:$0x1]
    %v85 = vlaneseq
    %v86 = vshrl.u32 %v85, 7
    %v87 = vsub.s32 0, %v86
    %v88 = vrot.slane %v83, %v87
    %vm90 = vcmask 261120
    %v92 = vsel %vm90, %v76, 0
    %v95 = vsel %vm90, %v77, 0
    %97 = vmatprep.subr.mxu0 0.0
    %98 = vmatpush1.msra.mxu0 %v79
    %99 = vmatprep.subr.mxu0 0.0
    %100 = vmatpush1.msra.mxu0 %v80
    %101 = vmatprep.subr.mxu0 0.0
    %102 = vmatpush1.msra.mxu0 %v81
    %103 = vmatprep.subr.mxu0 0.0
    %104 = vmatpush1.msra.mxu0 %v82
    %105 = vmatprep.subr.mxu0 0.0
    %106 = vmatpush1.msra.mxu0 0.0
    %107 = vmatprep.subr.mxu0 0.0
    %108 = vmatpush1.msra.mxu0 0.0
    %109 = vmatprep.subr.mxu0 0.0
    %110 = vmatpush1.msra.mxu0 0.0
    %111 = vmatprep.subr.mxu0 0.0
    %112 = vmatpush1.msra.mxu0 0.0
    %113 = vmatprep.subr.mxu0 0.0
    %114 = vmatpush1.msra.mxu0 0.0
    %115 = vmatprep.subr.mxu0 0.0
    %116 = vmatpush1.msra.mxu0 0.0
    %117 = vmatprep.subr.mxu0 0.0
    %118 = vmatpush1.msra.mxu0 0.0
    %119 = vmatprep.subr.mxu0 0.0
    %120 = vmatpush1.msra.mxu0 0.0
    %121 = vmatprep.subr.mxu0 0.0
    %122 = vmatpush1.msra.mxu0 0.0
    %123 = vmatprep.subr.mxu0 0.0
    %124 = vmatpush1.msra.mxu0 0.0
    %125 = vmatprep.subr.mxu0 0.0
    %126 = vmatpush1.msra.mxu0 0.0
    %127 = vmatprep.subr.mxu0 0.0
    %128 = vmatpush1.msra.mxu0 0.0
    %129 = vmatprep.subr.mxu0 0.0
    %130 = vmatpush1.msra.mxu0 0.0
    %131 = vmatprep.subr.mxu0 0.0
    %132 = vmatpush1.msra.mxu0 0.0
    %133 = vmatprep.subr.mxu0 0.0
    %134 = vmatpush1.msra.mxu0 0.0
    %135 = vmatprep.subr.mxu0 0.0
    %136 = vmatpush1.msra.mxu0 0.0
    %137 = vmatprep.subr.mxu0 0.0
    %138 = vmatpush1.msra.mxu0 0.0
    %139 = vmatprep.subr.mxu0 0.0
    %140 = vmatpush1.msra.mxu0 0.0
    %141 = vmatprep.subr.mxu0 0.0
    %142 = vmatpush1.msra.mxu0 0.0
    %143 = vmatprep.subr.mxu0 0.0
    %144 = vmatpush1.msra.mxu0 0.0
    %145 = vmatprep.subr.mxu0 0.0
    %146 = vmatpush1.msra.mxu0 0.0
    %147 = vmatprep.subr.mxu0 0.0
    %148 = vmatpush1.msra.mxu0 0.0
    %149 = vmatprep.subr.mxu0 0.0
    %150 = vmatpush1.msra.mxu0 0.0
    %151 = vmatprep.subr.mxu0 0.0
    %152 = vmatpush1.msra.mxu0 0.0
    %153 = vmatprep.subr.mxu0 0.0
    %154 = vmatpush1.msra.mxu0 0.0
    %155 = vmatprep.subr.mxu0 0.0
    %156 = vmatpush1.msra.mxu0 0.0
    %157 = vmatprep.subr.mxu0 0.0
    %158 = vmatpush1.msra.mxu0 0.0
    %159 = vmatprep.subr.mxu0 0.0
    %160 = vmatpush1.msra.mxu0 0.0
    %161 = vmatprep.mubr.f32.mxu0 0.0
    %162 = vmatmul.mubr.f32.gmra.mrb[0].mxu0 %v92
    %v163 = vpop.f32.mrb[0].mxu0
    %v164 = vadd.f32 %v88, %v163
    %v165 = vpop.f32.mrb[0].mxu0
    %166 = vmatprep.mubr.f32.mxu0 0.0
    %167 = vmatmul.mubr.f32.gmra.mrb[0].mxu0 %v95
    %v168 = vpop.f32.mrb[0].mxu0
    %v169 = vadd.f32 %v88, %v168
    %v170 = vpop.f32.mrb[0].mxu0
    %171 = vdwg.mxu0
    %v172 = vtanh.pop %v164
    %v173 = vtanh.pop %v169
    %v174 = vld [vmem:[#allocation8] sm:$0xff]
    %v175 = vld [vmem:[#allocation8 + $0x8] sm:$0xff]
    %v176 = vld [vmem:[#allocation8 + $0x10] sm:$0xff]
    %v177 = vld [vmem:[#allocation8 + $0x18] sm:$0xff]
    %v178 = vld [vmem:[%s5] sm:$0x1]
    %v180 = vlaneseq
    %v181 = vshrl.u32 %v180, 7
    %v182 = vsub.s32 0, %v181
    %v183 = vrot.slane %v178, %v182
    %v186 = vsel %vm90, %v78, 0
    %188 = vmatprep.subr.mxu0 0.0
    %189 = vmatpush1.msra.mxu0 %v174
    %190 = vmatprep.subr.mxu0 0.0
    %191 = vmatpush1.msra.mxu0 %v175
    %192 = vmatprep.subr.mxu0 0.0
    %193 = vmatpush1.msra.mxu0 %v176
    %194 = vmatprep.subr.mxu0 0.0
    %195 = vmatpush1.msra.mxu0 %v177
    %196 = vmatprep.subr.mxu0 0.0
    %197 = vmatpush1.msra.mxu0 0.0
    %198 = vmatprep.subr.mxu0 0.0
    %199 = vmatpush1.msra.mxu0 0.0
    %200 = vmatprep.subr.mxu0 0.0
    %201 = vmatpush1.msra.mxu0 0.0
    %202 = vmatprep.subr.mxu0 0.0
    %203 = vmatpush1.msra.mxu0 0.0
    %204 = vmatprep.subr.mxu0 0.0
    %205 = vmatpush1.msra.mxu0 0.0
    %206 = vmatprep.subr.mxu0 0.0
    %207 = vmatpush1.msra.mxu0 0.0
    %208 = vmatprep.subr.mxu0 0.0
    %209 = vmatpush1.msra.mxu0 0.0
    %210 = vmatprep.subr.mxu0 0.0
    %211 = vmatpush1.msra.mxu0 0.0
    %212 = vmatprep.subr.mxu0 0.0
    %213 = vmatpush1.msra.mxu0 0.0
    %214 = vmatprep.subr.mxu0 0.0
    %215 = vmatpush1.msra.mxu0 0.0
    %216 = vmatprep.subr.mxu0 0.0
    %217 = vmatpush1.msra.mxu0 0.0
    %218 = vmatprep.subr.mxu0 0.0
    %219 = vmatpush1.msra.mxu0 0.0
    %220 = vmatprep.subr.mxu0 0.0
    %221 = vmatpush1.msra.mxu0 0.0
    %222 = vmatprep.subr.mxu0 0.0
    %223 = vmatpush1.msra.mxu0 0.0
    %224 = vmatprep.subr.mxu0 0.0
    %225 = vmatpush1.msra.mxu0 0.0
    %226 = vmatprep.subr.mxu0 0.0
    %227 = vmatpush1.msra.mxu0 0.0
    %228 = vmatprep.subr.mxu0 0.0
    %229 = vmatpush1.msra.mxu0 0.0
    %230 = vmatprep.subr.mxu0 0.0
    %231 = vmatpush1.msra.mxu0 0.0
    %232 = vmatprep.subr.mxu0 0.0
    %233 = vmatpush1.msra.mxu0 0.0
    %234 = vmatprep.subr.mxu0 0.0
    %235 = vmatpush1.msra.mxu0 0.0
    %236 = vmatprep.subr.mxu0 0.0
    %237 = vmatpush1.msra.mxu0 0.0
    %238 = vmatprep.subr.mxu0 0.0
    %239 = vmatpush1.msra.mxu0 0.0
    %240 = vmatprep.subr.mxu0 0.0
    %241 = vmatpush1.msra.mxu0 0.0
    %242 = vmatprep.subr.mxu0 0.0
    %243 = vmatpush1.msra.mxu0 0.0
    %244 = vmatprep.subr.mxu0 0.0
    %245 = vmatpush1.msra.mxu0 0.0
    %246 = vmatprep.subr.mxu0 0.0
    %247 = vmatpush1.msra.mxu0 0.0
    %248 = vmatprep.subr.mxu0 0.0
    %249 = vmatpush1.msra.mxu0 0.0
    %250 = vmatprep.subr.mxu0 0.0
    %251 = vmatpush1.msra.mxu0 0.0
    %252 = vmatprep.mubr.f32.mxu0 0.0
    %253 = vmatmul.mubr.f32.gmra.mrb[0].mxu0 %v186
    %v254 = vpop.f32.mrb[0].mxu0
    %v255 = vadd.f32 %v183, %v254
    %v256 = vpop.f32.mrb[0].mxu0
    %257 = vdwg.mxu0
    %v258 = vtanh.pop %v255
    %v259 = vld [vmem:[%s6] sm:$0x1]
    %v261 = vlaneseq
    %v262 = vshrl.u32 %v261, 7
    %v263 = vsub.s32 0, %v262
    %v264 = vrot.slane %v259, %v263
    %v266 = vmul.f32 %v258, %v264
    %v269 = vunpack.c.l.s4 1966171168
    %v270 = vunpack.c.0.s8 %v269
    %v271 = vlaneseq
    %v272 = vshrl.u32 %v271, 7
    %v273 = vsub.s32 %v270, %v272
    %v274 = vrot.slane %v266, %v273
    %v275 = vcombine.high %v274, %v274
    %v277 = vunpack.c.l.s4 1966171168
    %v278 = vunpack.c.0.s8 %v277
    %v279 = vlaneseq
    %v280 = vshrl.u32 %v279, 7
    %v281 = vsub.s32 %v278, %v280
    %v282 = vrot.slane %v274, %v281
    %v284 = vunpack.c.l.s4 1966171168
    %v285 = vunpack.c.0.s8 %v284
    %v286 = vlaneseq
    %v287 = vshrl.u32 %v286, 7
    %v288 = vsub.s32 %v285, %v287
    %v289 = vrot.slane %v275, %v288
    %v290 = vlaneseq
    %v291 = vshrl.u32 %v290, 7
    %v292 = vsub.s32 0, %v291
    %v293 = vrot.slane %v282, %v292
    %v294 = vlaneseq
    %v295 = vshrl.u32 %v294, 7
    %v296 = vsub.s32 0, %v295
    %v297 = vrot.slane %v289, %v296
    %v300 = vmul.f32 %v172, %v293
    %v301 = vmul.f32 %v173, %v297
    %v302 = vsel %vm90, %v300, 0.0
    %303 = vadd.xlane.f32.xlu0 %v302
    %v304 = vpop.xlane.xlu0 %303
    %v305 = vsel %vm90, %v301, 0.0
    %306 = vadd.xlane.f32.xlu0 %v305
    %v307 = vpop.xlane.xlu0 %306
    %v308 = vld [vmem:[#allocation2] sm:$0x1]
    %v310 = vlaneseq
    %v311 = vshrl.u32 %v310, 7
    %v312 = vsub.s32 0, %v311
    %v313 = vrot.slane %v308, %v312
    %314 = vset.pattern.permute.xlu0 0
    %315 = vperm.xlu0 %314, %v313
    %v316 = vpop.permute.xlu0 %315
    %v318 = vadd.f32 %v304, %v316
    %v319 = vadd.f32 %v307, %v316
    %v322 = vlaneseq
    %v323 = vand.u32 %v322, 127
    %v324 = vlaneseq
    %v325 = vshrl.u32 %v324, 7
    %v326 = vsub.s32 %v323, %v325
    %v327 = vrot.slane %v318, %v326
    %v328 = vlaneseq
    %v329 = vshrl.u32 %v328, 7
    %v330 = vsub.s32 %v323, %v329
    %v331 = vrot.slane %v319, %v330
    %vm332 = vcmask 1041409
    %v333 = vsel %vm332, %v331, %v327
    %vm335 = vcmask 58368
    %v336 = vsel %vm335, %v333, -inf
    %337 = vmax.xlane.f32.xlu0 %v336
    %v338 = vpop.xlane.xlu0 %337
    %v340 = vlaneseq
    %v341 = vshrl.u32 %v340, 7
    %v342 = vsub.s32 0, %v341
    %v343 = vrot.slane %v338, %v342
    %v344 = vlaneseq
    %v345 = vshrl.u32 %v344, 7
    %v346 = vsub.s32 1, %v345
    %v347 = vrot.slane %v338, %v346
    %v350 = vsub.f32 %v318, %v343
    %v351 = vsub.f32 %v319, %v347
    %v352 = vmul.f32 %v350, 1.442695
    %v353 = vpow.pop %v352
    %v354 = vmul.f32 %v351, 1.442695
    %v355 = vpow.pop %v354
    %358 = vset.pattern.permute.xlu0 0
    %359 = vperm.xlu0 %358, %v353
    %v360 = vpop.permute.xlu0 %359
    %361 = vset.pattern.permute.xlu0 0
    %362 = vperm.xlu0 %361, %v355
    %v363 = vpop.permute.xlu0 %362
    %v364 = vlaneseq
    %v365 = vshrl.u32 %v364, 7
    %v366 = vsub.s32 %v323, %v365
    %v367 = vrot.slane %v360, %v366
    %v368 = vlaneseq
    %v369 = vshrl.u32 %v368, 7
    %v370 = vsub.s32 %v323, %v369
    %v371 = vrot.slane %v363, %v370
    %v372 = vsel %vm332, %v371, %v367
    %v374 = vsel %vm335, %v372, 0.0
    %375 = vadd.xlane.f32.xlu0 %v374
    %v376 = vpop.xlane.xlu0 %375
    %v378 = vlaneseq
    %v379 = vshrl.u32 %v378, 7
    %v380 = vsub.s32 0, %v379
    %v381 = vrot.slane %v376, %v380
    %v382 = vlaneseq
    %v383 = vshrl.u32 %v382, 7
    %v384 = vsub.s32 1, %v383
    %v385 = vrot.slane %v376, %v384
    %v388 = vrcp.pop %v381
    %v389 = vmul.f32 %v353, %v388
    %v390 = vrcp.pop %v385
    %v391 = vmul.f32 %v355, %v390
    %393 = vset.pattern.permute.xlu0 0
    %394 = vperm.xlu0 %393, %v389
    %v395 = vpop.permute.xlu0 %394
    %398 = vset.pattern.permute.xlu0 0
    %399 = vperm.xlu0 %398, %v391
    %v400 = vpop.permute.xlu0 %399
    %v402 = vmul.f32 %v395, %v76
    %v403 = vmul.f32 %v400, %v77
    %v404 = vsel %vm90, %v402, 0.0
    %v405 = vrot.slane %v404, 4
    %v406 = vadd.f32 %v404, %v405
    %v407 = vrot.slane %v406, 2
    %v408 = vadd.f32 %v406, %v407
    %v409 = vrot.slane %v408, 1
    %v410 = vadd.f32 %v408, %v409
    %v411 = vsel %vm90, %v403, 0.0
    %v412 = vrot.slane %v411, 4
    %v413 = vadd.f32 %v411, %v412
    %v414 = vrot.slane %v413, 2
    %v415 = vadd.f32 %v413, %v414
    %v416 = vrot.slane %v415, 1
    %v417 = vadd.f32 %v415, %v416
    %v418 = vmul.f32 %v410, %v410
    %v419 = vmul.f32 %v417, %v417
    %v422 = vsel %vm332, %v419, %v418
    %vm424 = vcmask 254976
    %v425 = vsel %vm424, %v422, 0.0
    %426 = vadd.xlane.f32.xlu0 %v425
    %v427 = vpop.xlane.xlu0 %426
    %v428 = vrsqrt.pop %v427
    %v429 = vmul.f32 %v427, %v428
    %vm430 = vcmp.eq.f32.partialorder %v427, inf
    %v431 = vsel %vm430, %v427, %v429
    %vm432 = vcmp.eq.f32.partialorder %v427, 0.0
    %v433 = vand.u32 %v427, 2147483648
    %v434 = vsel %vm432, %v433, %v431
    %v435 = vadd.f32 %v434, 1e-08
    %v437 = vrot.slane %v435, 1
    %v440 = vrcp.pop %v435
    %v441 = vmul.f32 %v410, %v440
    %v442 = vrcp.pop %v437
    %v443 = vmul.f32 %v417, %v442
    %v446 = vrot.slane %v443, 7
    %v447 = vsel %vm332, %v446, %v441
    %449 = vst.msk [vmem:[#allocation9] sm:$0x3] %vm424, %v447
    %v450 = vlaneseq
    %v451 = vshrl.u32 %v450, 7
    %v452 = vsub.s32 %v323, %v451
    %v453 = vrot.slane %v395, %v452
    %v454 = vlaneseq
    %v455 = vshrl.u32 %v454, 7
    %v456 = vsub.s32 %v323, %v455
    %v457 = vrot.slane %v400, %v456
    %v458 = vsel %vm332, %v457, %v453
    %460 = vst.msk [vmem:[#allocation10] sm:$0x3] %vm335, %v458
    // Predicated region
    $region46: #{tpu_custom_call.1} parent=1 // pred_check
      _
    $region47: #{tpu_custom_call.1} parent=1 // pred_check_branch
      %462 = sbr.rel (0) target = $region49
    $region48: #{tpu_custom_call.1} parent=1 // pred_region
      %s464 = ssub.s32 32, 32
      %465 = vsyncadd [#allocation5], %s464
      %s467 = sshll.u32 [#allocation9], 4
      %s468 = int_to_ptr.vmem [resolvable:$true] %s467
      %470 = dma.vmem_to_hbm [thread:$0]  %s468, 32, %s8, [#allocation5]
    $region49: #{tpu_custom_call.1} parent=1 // pred_fallthru
      _
    // Predicated region
    $region50: #{tpu_custom_call.1} parent=1 // pred_check
      _
    $region51: #{tpu_custom_call.1} parent=1 // pred_check_branch
      %472 = sbr.rel (0) target = $region53
    $region52: #{tpu_custom_call.1} parent=1 // pred_region
      %s474 = ssub.s32 32, 32
      %475 = vsyncadd [#allocation11], %s474
      %s477 = sshll.u32 [#allocation10], 4
      %s478 = int_to_ptr.vmem [resolvable:$true] %s477
      %480 = dma.vmem_to_hbm [thread:$0]  %s478, 32, %s9, [#allocation11]
    $region53: #{tpu_custom_call.1} parent=1 // pred_fallthru
      _
    // Predicated region
    $region54: #{tpu_custom_call.1} parent=1 // pred_check
      _
    $region55: #{tpu_custom_call.1} parent=1 // pred_check_branch
      %482 = sbr.rel (0) target = $region57
    $region56: #{tpu_custom_call.1} parent=1 // pred_region
      %483 = dma.done [#allocation5], 32
    $region57: #{tpu_custom_call.1} parent=1 // pred_fallthru
      _
    // Predicated region
    $region58: #{tpu_custom_call.1} parent=1 // pred_check
      _
    $region59: #{tpu_custom_call.1} parent=1 // pred_check_branch
      %485 = sbr.rel (0) target = $region61
    $region60: #{tpu_custom_call.1} parent=1 // pred_region
      %486 = dma.done [#allocation11], 32
    $region61: #{tpu_custom_call.1} parent=1 // pred_fallthru
      _
    %487 = vsyncpa [#allocation4], 1
    %488 = vsyncpa [#allocation7], 1
    %489 = vsyncpa [#allocation5], 1
    %490 = vsyncpa [#allocation11], 1

</llo_original>
